<compile_context>
chip_gen: v7x
topology: tpu7x:2x2x1
jax: 0.10.0
libtpu: 0.0.40
codegen_flags: <defaults>
</compile_context>

<pallas_src>
import jax
import jax.numpy as jnp
from jax.experimental import pallas as pl
from jax.experimental.pallas import tpu as pltpu

_EPS = 1e-5  # nn.BatchNorm1d default eps


def _residual_block_kernel(xp_ref, w1_ref, w2_ref, g1_ref, b1_ref, g2_ref,
                           b2_ref, out_ref, h1_ref):
    # xp_ref : (N, L+2, Cp)   zero-padded input, channels-last, f32
    # w1_ref : (3*Cp, Cp)     conv1 im2col weight slab (tap-major), bf16
    # w2_ref : (3*Cp, Cp)     conv2 im2col weight slab, bf16
    # g*/b*  : (1, Cp)        BN affine params, f32
    # out_ref: (N, L, Cp)     f32
    # h1_ref : (N, L+2, Cp)   f32 scratch holding relu(bn1(conv1)) with a 1-row halo
    N, Lp2, Cp = xp_ref.shape
    L = Lp2 - 2
    M = N * L

    # ---- conv1: im2col (3 shifted views concatenated on the lane axis) -> one MXU
    #      matmul, bf16 operands / f32 accumulate ----
    x0 = xp_ref[:, 0:L, :].reshape(M, Cp)
    res = xp_ref[:, 1:L + 1, :].reshape(M, Cp)   # centre tap; reused as the residual (f32)
    x2 = xp_ref[:, 2:L + 2, :].reshape(M, Cp)
    xcol = jnp.concatenate([x0, res, x2], axis=-1).astype(jnp.bfloat16)   # (M, 3*Cp)
    h = jnp.dot(xcol, w1_ref[...], preferred_element_type=jnp.float32)    # (M, Cp)

    # ---- bn1 (training-mode stats over batch*length, per channel) + relu, f32 VPU ----
    m1 = jnp.mean(h, axis=0, keepdims=True)
    v1 = jnp.mean((h - m1) ** 2, axis=0, keepdims=True)
    h = g1_ref[...] * (h - m1) * jax.lax.rsqrt(v1 + _EPS) + b1_ref[...]
    h = jnp.maximum(h, 0.0)

    # ---- stage relu(bn1(conv1)) into the haloed scratch: zero the two halo rows once,
    #      write the interior once (no full zero-fill + copy as before) ----
    h1_ref[:, 0:1, :] = jnp.zeros((N, 1, Cp), jnp.float32)
    h1_ref[:, L + 1:L + 2, :] = jnp.zeros((N, 1, Cp), jnp.float32)
    h1_ref[:, 1:L + 1, :] = h.reshape(N, L, Cp)

    # ---- conv2: same single im2col matmul (centre tap reused from registers) ----
    h0 = h1_ref[:, 0:L, :].reshape(M, Cp)
    h2 = h1_ref[:, 2:L + 2, :].reshape(M, Cp)
    hcol = jnp.concatenate([h0, h, h2], axis=-1).astype(jnp.bfloat16)     # (M, 3*Cp)
    o = jnp.dot(hcol, w2_ref[...], preferred_element_type=jnp.float32)    # (M, Cp)

    # ---- bn2 + residual add (downsample is None) + relu ----
    m2 = jnp.mean(o, axis=0, keepdims=True)
    v2 = jnp.mean((o - m2) ** 2, axis=0, keepdims=True)
    o = g2_ref[...] * (o - m2) * jax.lax.rsqrt(v2 + _EPS) + b2_ref[...]
    out_ref[...] = jnp.maximum(o + res, 0.0).reshape(N, L, Cp).astype(out_ref.dtype)


def _round_up(x, m):
    return (x + m - 1) // m * m


def residual_block_pallas(x_ncl, w1, w2, g1, b1, g2, b2):
    """x_ncl: (N, Cin, L); w1/w2: (Cout, Cin, 3) in PyTorch Conv1d layout."""
    N, Cin, L = x_ncl.shape
    Cout = w1.shape[0]
    assert Cin == Cout, "downsample=None => residual add requires Cin == Cout"
    C = Cin
    Cp = _round_up(max(C, 128), 128)   # lane-dense channel axis

    # glue: NCL -> NLC, zero-pad L (conv padding=1) and channels (lane padding)
    x_nlc = jnp.transpose(x_ncl, (0, 2, 1)).astype(jnp.float32)
    xp = jnp.pad(x_nlc, ((0, 0), (1, 1), (0, Cp - C)))            # (N, L+2, Cp)

    def pack_w(w):
        # (Cout, Cin, 3) -> tap-major im2col slab (3*Cp, Cp), bf16 (MXU-native operands)
        wk = jnp.transpose(w, (2, 1, 0)).astype(jnp.float32)      # (3, Cin, Cout)
        wk = jnp.pad(wk, ((0, 0), (0, Cp - C), (0, Cp - C)))      # (3, Cp, Cp)
        return wk.reshape(3 * Cp, Cp).astype(jnp.bfloat16)

    def pack_v(v):
        return jnp.pad(v.astype(jnp.float32), (0, Cp - C)).reshape(1, Cp)

    w1s, w2s = pack_w(w1), pack_w(w2)
    g1_, b1_, g2_, b2_ = pack_v(g1), pack_v(b1), pack_v(g2), pack_v(b2)

    # TODO(synk): for large N*L (or v7x's 64 MiB VMEM) tile the grid over N/L with a
    # 1-row halo and a two-pass BatchNorm (sum/sumsq accumulators); a single resident
    # block is correct and fastest at these small shapes.
    out_nlc = pl.pallas_call(
        _residual_block_kernel,
        out_shape=jax.ShapeDtypeStruct((N, L, Cp), jnp.float32),
        grid=(1,),
        in_specs=[
            pl.BlockSpec((N, L + 2, Cp), lambda i: (0, 0, 0)),
            pl.BlockSpec((3 * Cp, Cp), lambda i: (0, 0)),
            pl.BlockSpec((3 * Cp, Cp), lambda i: (0, 0)),
            pl.BlockSpec((1, Cp), lambda i: (0, 0)),
            pl.BlockSpec((1, Cp), lambda i: (0, 0)),
            pl.BlockSpec((1, Cp), lambda i: (0, 0)),
            pl.BlockSpec((1, Cp), lambda i: (0, 0)),
        ],
        out_specs=pl.BlockSpec((N, L, Cp), lambda i: (0, 0, 0)),
        scratch_shapes=[
            pltpu.VMEM((N, L + 2, Cp), jnp.float32),   # relu(bn1(conv1)) with L halo
        ],
        compiler_params=pltpu.CompilerParams(dimension_semantics=("arbitrary",)),
    )(xp, w1s, w2s, g1_, b1_, g2_, b2_)

    return jnp.transpose(out_nlc[:, :, :C], (0, 2, 1))            # back to NCL


def _reference_forward(x, w1, w2, g1, b1, g2, b2, matmul_dtype=jnp.float32):
    """Plain-JAX reference matching PyTorch semantics (NCL layout).

    matmul_dtype=float32  -> exact fp32 (PyTorch-like) reference.
    matmul_dtype=bfloat16 -> same bf16-in / f32-accumulate arithmetic as the kernel.
    """
    precision = (jax.lax.Precision.HIGHEST
                 if matmul_dtype == jnp.float32 else jax.lax.Precision.DEFAULT)

    def conv(h, w):
        return jax.lax.conv_general_dilated(
            h.astype(matmul_dtype), w.astype(matmul_dtype),
            window_strides=(1,), padding=((1, 1),),
            dimension_numbers=('NCH', 'OIH', 'NCH'),
            preferred_element_type=jnp.float32,
            precision=precision)

    def bn(h, g, b):
        m = jnp.mean(h, axis=(0, 2), keepdims=True)
        v = jnp.mean((h - m) ** 2, axis=(0, 2), keepdims=True)
        return g[None, :, None] * (h - m) * jax.lax.rsqrt(v + _EPS) + b[None, :, None]

    h = jax.nn.relu(bn(conv(x, w1), g1, b1))
    o = bn(conv(h, w2), g2, b2)
    return jax.nn.relu(o + x)


if __name__ == "__main__":
    N, C, L = 2, 4, 16   # batch, channels (in == out), sequence length

    key = jax.random.PRNGKey(0)
    kx, kw1, kw2 = jax.random.split(key, 3)

    x = jax.random.normal(kx, (N, C, L), jnp.float32)
    # PyTorch Conv1d default init: U(-1/sqrt(fan_in), 1/sqrt(fan_in)), fan_in = Cin*k
    bound = 1.0 / (C * 3) ** 0.5
    w1 = jax.random.uniform(kw1, (C, C, 3), jnp.float32, -bound, bound)
    w2 = jax.random.uniform(kw2, (C, C, 3), jnp.float32, -bound, bound)
    # BatchNorm1d default affine init: weight=1, bias=0
    g1 = jnp.ones((C,), jnp.float32)
    b1 = jnp.zeros((C,), jnp.float32)
    g2 = jnp.ones((C,), jnp.float32)
    b2 = jnp.zeros((C,), jnp.float32)

    out = jax.block_until_ready(residual_block_pallas(x, w1, w2, g1, b1, g2, b2))
    assert out.shape == (N, C, L)

    # structural check: compare against a reference using the same bf16-operand /
    # f32-accumulate matmul arithmetic (catches any layout/indexing error)
    ref_bf16 = _reference_forward(x, w1, w2, g1, b1, g2, b2, matmul_dtype=jnp.bfloat16)
    err_struct = float(jnp.max(jnp.abs(out - ref_bf16)))
    assert err_struct < 1e-2, "bf16-consistent max abs err = %g" % err_struct

    # numeric sanity check against the exact fp32 reference; looser tolerance because
    # the kernel deliberately feeds bf16 into the MXU (per the performance guidance)
    ref_f32 = _reference_forward(x, w1, w2, g1, b1, g2, b2, matmul_dtype=jnp.float32)
    err_full = float(jnp.max(jnp.abs(out - ref_f32)))
    assert err_full < 1e-1, "fp32-reference max abs err = %g" % err_full

    print("KERNEL_OK")
</pallas_src>

<mosaic_0001>
module attributes {stable_mosaic.version = 11 : i64} {
  func.func @_residual_block_kernel(%arg0: i32, %arg1: memref<2x18x128xf32, #tpu.memory_space<vmem>>, %arg2: memref<384x128xbf16, #tpu.memory_space<vmem>>, %arg3: memref<384x128xbf16, #tpu.memory_space<vmem>>, %arg4: memref<1x128xf32, #tpu.memory_space<vmem>>, %arg5: memref<1x128xf32, #tpu.memory_space<vmem>>, %arg6: memref<1x128xf32, #tpu.memory_space<vmem>>, %arg7: memref<1x128xf32, #tpu.memory_space<vmem>>, %arg8: memref<2x16x128xf32, #tpu.memory_space<vmem>>, %arg9: memref<2x18x128xf32, #tpu.memory_space<vmem>>) attributes {dimension_semantics = [#tpu.dimension_semantics<arbitrary>], iteration_bounds = array<i64: 1>, scalar_prefetch = 0 : i64, scratch_operands = 1 : i64, tpu.core_type = #tpu.core_type<tc>, window_params = [{pipeline_mode = #tpu.pipeline_mode<synchronous>, transform_indices = @transform_0, window_bounds = array<i64: 2, 18, 128>}, {pipeline_mode = #tpu.pipeline_mode<synchronous>, transform_indices = @transform_1, window_bounds = array<i64: 384, 128>}, {pipeline_mode = #tpu.pipeline_mode<synchronous>, transform_indices = @transform_2, window_bounds = array<i64: 384, 128>}, {pipeline_mode = #tpu.pipeline_mode<synchronous>, transform_indices = @transform_3, window_bounds = array<i64: 1, 128>}, {pipeline_mode = #tpu.pipeline_mode<synchronous>, transform_indices = @transform_4, window_bounds = array<i64: 1, 128>}, {pipeline_mode = #tpu.pipeline_mode<synchronous>, transform_indices = @transform_5, window_bounds = array<i64: 1, 128>}, {pipeline_mode = #tpu.pipeline_mode<synchronous>, transform_indices = @transform_6, window_bounds = array<i64: 1, 128>}, {pipeline_mode = #tpu.pipeline_mode<synchronous>, transform_indices = @transform_7, window_bounds = array<i64: 2, 16, 128>}]} {
    %c0 = arith.constant 0 : index
    %c0_0 = arith.constant 0 : index
    %c0_1 = arith.constant 0 : index
    %0 = vector.load %arg1[%c0, %c0_0, %c0_1] : memref<2x18x128xf32, #tpu.memory_space<vmem>>, vector<2x16x128xf32>
    %1 = vector.shape_cast %0 : vector<2x16x128xf32> to vector<32x128xf32>
    %c0_2 = arith.constant 0 : index
    %c1 = arith.constant 1 : index
    %c0_3 = arith.constant 0 : index
    %2 = vector.load %arg1[%c0_2, %c1, %c0_3] : memref<2x18x128xf32, #tpu.memory_space<vmem>>, vector<2x16x128xf32>
    %3 = vector.shape_cast %2 : vector<2x16x128xf32> to vector<32x128xf32>
    %c0_4 = arith.constant 0 : index
    %c2 = arith.constant 2 : index
    %c0_5 = arith.constant 0 : index
    %4 = vector.load %arg1[%c0_4, %c2, %c0_5] : memref<2x18x128xf32, #tpu.memory_space<vmem>>, vector<2x16x128xf32>
    %5 = vector.shape_cast %4 : vector<2x16x128xf32> to vector<32x128xf32>
    %6 = tpu.concatenate %1, %3, %5 in 1 : vector<32x128xf32>, vector<32x128xf32>, vector<32x128xf32> -> vector<32x384xf32>
    %7 = arith.truncf %6 : vector<32x384xf32> to vector<32x384xbf16>
    %c0_6 = arith.constant 0 : index
    %c0_7 = arith.constant 0 : index
    %8 = vector.load %arg2[%c0_6, %c0_7] : memref<384x128xbf16, #tpu.memory_space<vmem>>, vector<384x128xbf16>
    %cst = arith.constant dense<0.000000e+00> : vector<32x128xf32>
    %9 = tpu.matmul %7, %8, %cst {dimension_numbers = #tpu.dot_dimension_numbers<[1], [0], [0], [1], [0, 0, 1, 1], [], []>} : vector<32x384xbf16>, vector<384x128xbf16>, vector<32x128xf32> -> vector<32x128xf32>
    %cst_8 = arith.constant dense<0.000000e+00> : vector<128xf32>
    %10 = vector.multi_reduction <add>, %9, %cst_8 [0] : vector<32x128xf32> to vector<128xf32>
    %11 = vector.shape_cast %10 : vector<128xf32> to vector<1x128xf32>
    %cst_9 = arith.constant 3.200000e+01 : f32
    %12 = vector.broadcast %cst_9 : f32 to vector<1x128xf32>
    %13 = arith.divf %11, %12 : vector<1x128xf32>
    %14 = vector.broadcast %13 : vector<1x128xf32> to vector<32x128xf32>
    %15 = arith.subf %9, %14 : vector<32x128xf32>
    %16 = arith.mulf %15, %15 : vector<32x128xf32>
    %cst_10 = arith.constant dense<0.000000e+00> : vector<128xf32>
    %17 = vector.multi_reduction <add>, %16, %cst_10 [0] : vector<32x128xf32> to vector<128xf32>
    %18 = vector.shape_cast %17 : vector<128xf32> to vector<1x128xf32>
    %cst_11 = arith.constant 3.200000e+01 : f32
    %19 = vector.broadcast %cst_11 : f32 to vector<1x128xf32>
    %20 = arith.divf %18, %19 : vector<1x128xf32>
    %c0_12 = arith.constant 0 : index
    %c0_13 = arith.constant 0 : index
    %21 = vector.load %arg4[%c0_12, %c0_13] : memref<1x128xf32, #tpu.memory_space<vmem>>, vector<1x128xf32>
    %22 = vector.broadcast %13 : vector<1x128xf32> to vector<32x128xf32>
    %23 = arith.subf %9, %22 : vector<32x128xf32>
    %24 = vector.broadcast %21 : vector<1x128xf32> to vector<32x128xf32>
    %25 = arith.mulf %24, %23 : vector<32x128xf32>
    %cst_14 = arith.constant 9.99999974E-6 : f32
    %26 = vector.broadcast %cst_14 : f32 to vector<1x128xf32>
    %27 = arith.addf %20, %26 : vector<1x128xf32>
    %28 = math.rsqrt %27 : vector<1x128xf32>
    %29 = vector.broadcast %28 : vector<1x128xf32> to vector<32x128xf32>
    %30 = arith.mulf %25, %29 : vector<32x128xf32>
    %c0_15 = arith.constant 0 : index
    %c0_16 = arith.constant 0 : index
    %31 = vector.load %arg5[%c0_15, %c0_16] : memref<1x128xf32, #tpu.memory_space<vmem>>, vector<1x128xf32>
    %32 = vector.broadcast %31 : vector<1x128xf32> to vector<32x128xf32>
    %33 = arith.addf %30, %32 : vector<32x128xf32>
    %cst_17 = arith.constant 0.000000e+00 : f32
    %34 = vector.broadcast %cst_17 : f32 to vector<32x128xf32>
    %35 = arith.maximumf %33, %34 : vector<32x128xf32>
    %cst_18 = arith.constant 0.000000e+00 : f32
    %36 = vector.broadcast %cst_18 : f32 to vector<2x1x128xf32>
    %c0_19 = arith.constant 0 : index
    %c0_20 = arith.constant 0 : index
    %c0_21 = arith.constant 0 : index
    %37 = vector.load %arg9[%c0_19, %c0_20, %c0_21] : memref<2x18x128xf32, #tpu.memory_space<vmem>>, vector<2x1x128xf32>
    tpu.vector_store %arg9[%c0_19, %c0_20, %c0_21], %36 {strides = array<i32>} : memref<2x18x128xf32, #tpu.memory_space<vmem>>, vector<2x1x128xf32>,
    %cst_22 = arith.constant 0.000000e+00 : f32
    %38 = vector.broadcast %cst_22 : f32 to vector<2x1x128xf32>
    %c0_23 = arith.constant 0 : index
    %c17 = arith.constant 17 : index
    %c0_24 = arith.constant 0 : index
    %39 = vector.load %arg9[%c0_23, %c17, %c0_24] : memref<2x18x128xf32, #tpu.memory_space<vmem>>, vector<2x1x128xf32>
    tpu.vector_store %arg9[%c0_23, %c17, %c0_24], %38 {strides = array<i32>} : memref<2x18x128xf32, #tpu.memory_space<vmem>>, vector<2x1x128xf32>,
    %40 = vector.shape_cast %35 : vector<32x128xf32> to vector<2x16x128xf32>
    %c0_25 = arith.constant 0 : index
    %c1_26 = arith.constant 1 : index
    %c0_27 = arith.constant 0 : index
    %41 = vector.load %arg9[%c0_25, %c1_26, %c0_27] : memref<2x18x128xf32, #tpu.memory_space<vmem>>, vector<2x16x128xf32>
    tpu.vector_store %arg9[%c0_25, %c1_26, %c0_27], %40 {strides = array<i32>} : memref<2x18x128xf32, #tpu.memory_space<vmem>>, vector<2x16x128xf32>,
    %c0_28 = arith.constant 0 : index
    %c0_29 = arith.constant 0 : index
    %c0_30 = arith.constant 0 : index
    %42 = vector.load %arg9[%c0_28, %c0_29, %c0_30] : memref<2x18x128xf32, #tpu.memory_space<vmem>>, vector<2x16x128xf32>
    %43 = vector.shape_cast %42 : vector<2x16x128xf32> to vector<32x128xf32>
    %c0_31 = arith.constant 0 : index
    %c2_32 = arith.constant 2 : index
    %c0_33 = arith.constant 0 : index
    %44 = vector.load %arg9[%c0_31, %c2_32, %c0_33] : memref<2x18x128xf32, #tpu.memory_space<vmem>>, vector<2x16x128xf32>
    %45 = vector.shape_cast %44 : vector<2x16x128xf32> to vector<32x128xf32>
    %46 = tpu.concatenate %43, %35, %45 in 1 : vector<32x128xf32>, vector<32x128xf32>, vector<32x128xf32> -> vector<32x384xf32>
    %47 = arith.truncf %46 : vector<32x384xf32> to vector<32x384xbf16>
    %c0_34 = arith.constant 0 : index
    %c0_35 = arith.constant 0 : index
    %48 = vector.load %arg3[%c0_34, %c0_35] : memref<384x128xbf16, #tpu.memory_space<vmem>>, vector<384x128xbf16>
    %cst_36 = arith.constant dense<0.000000e+00> : vector<32x128xf32>
    %49 = tpu.matmul %47, %48, %cst_36 {dimension_numbers = #tpu.dot_dimension_numbers<[1], [0], [0], [1], [0, 0, 1, 1], [], []>} : vector<32x384xbf16>, vector<384x128xbf16>, vector<32x128xf32> -> vector<32x128xf32>
    %cst_37 = arith.constant dense<0.000000e+00> : vector<128xf32>
    %50 = vector.multi_reduction <add>, %49, %cst_37 [0] : vector<32x128xf32> to vector<128xf32>
    %51 = vector.shape_cast %50 : vector<128xf32> to vector<1x128xf32>
    %cst_38 = arith.constant 3.200000e+01 : f32
    %52 = vector.broadcast %cst_38 : f32 to vector<1x128xf32>
    %53 = arith.divf %51, %52 : vector<1x128xf32>
    %54 = vector.broadcast %53 : vector<1x128xf32> to vector<32x128xf32>
    %55 = arith.subf %49, %54 : vector<32x128xf32>
    %56 = arith.mulf %55, %55 : vector<32x128xf32>
    %cst_39 = arith.constant dense<0.000000e+00> : vector<128xf32>
    %57 = vector.multi_reduction <add>, %56, %cst_39 [0] : vector<32x128xf32> to vector<128xf32>
    %58 = vector.shape_cast %57 : vector<128xf32> to vector<1x128xf32>
    %cst_40 = arith.constant 3.200000e+01 : f32
    %59 = vector.broadcast %cst_40 : f32 to vector<1x128xf32>
    %60 = arith.divf %58, %59 : vector<1x128xf32>
    %c0_41 = arith.constant 0 : index
    %c0_42 = arith.constant 0 : index
    %61 = vector.load %arg6[%c0_41, %c0_42] : memref<1x128xf32, #tpu.memory_space<vmem>>, vector<1x128xf32>
    %62 = vector.broadcast %53 : vector<1x128xf32> to vector<32x128xf32>
    %63 = arith.subf %49, %62 : vector<32x128xf32>
    %64 = vector.broadcast %61 : vector<1x128xf32> to vector<32x128xf32>
    %65 = arith.mulf %64, %63 : vector<32x128xf32>
    %cst_43 = arith.constant 9.99999974E-6 : f32
    %66 = vector.broadcast %cst_43 : f32 to vector<1x128xf32>
    %67 = arith.addf %60, %66 : vector<1x128xf32>
    %68 = math.rsqrt %67 : vector<1x128xf32>
    %69 = vector.broadcast %68 : vector<1x128xf32> to vector<32x128xf32>
    %70 = arith.mulf %65, %69 : vector<32x128xf32>
    %c0_44 = arith.constant 0 : index
    %c0_45 = arith.constant 0 : index
    %71 = vector.load %arg7[%c0_44, %c0_45] : memref<1x128xf32, #tpu.memory_space<vmem>>, vector<1x128xf32>
    %72 = vector.broadcast %71 : vector<1x128xf32> to vector<32x128xf32>
    %73 = arith.addf %70, %72 : vector<32x128xf32>
    %74 = arith.addf %73, %3 : vector<32x128xf32>
    %cst_46 = arith.constant 0.000000e+00 : f32
    %75 = vector.broadcast %cst_46 : f32 to vector<32x128xf32>
    %76 = arith.maximumf %74, %75 : vector<32x128xf32>
    %77 = vector.shape_cast %76 : vector<32x128xf32> to vector<2x16x128xf32>
    %c0_47 = arith.constant 0 : index
    %c0_48 = arith.constant 0 : index
    %c0_49 = arith.constant 0 : index
    %78 = vector.load %arg8[%c0_47, %c0_48, %c0_49] : memref<2x16x128xf32, #tpu.memory_space<vmem>>, vector<2x16x128xf32>
    tpu.vector_store %arg8[%c0_47, %c0_48, %c0_49], %77 {strides = array<i32>} : memref<2x16x128xf32, #tpu.memory_space<vmem>>, vector<2x16x128xf32>,
    return
  }
  func.func @transform_0(%arg0: i32) -> (i32, i32, i32) {
    %c0_i32 = arith.constant 0 : i32
    %c0_i32_0 = arith.constant 0 : i32
    %c0_i32_1 = arith.constant 0 : i32
    %c0_i32_2 = arith.constant 0 : i32
    return %c0_i32, %c0_i32_0, %c0_i32_1 : i32, i32, i32
  }
  func.func @transform_1(%arg0: i32) -> (i32, i32) {
    %c0_i32 = arith.constant 0 : i32
    %c0_i32_0 = arith.constant 0 : i32
    %c0_i32_1 = arith.constant 0 : i32
    return %c0_i32, %c0_i32_0 : i32, i32
  }
  func.func @transform_2(%arg0: i32) -> (i32, i32) {
    %c0_i32 = arith.constant 0 : i32
    %c0_i32_0 = arith.constant 0 : i32
    %c0_i32_1 = arith.constant 0 : i32
    return %c0_i32, %c0_i32_0 : i32, i32
  }
  func.func @transform_3(%arg0: i32) -> (i32, i32) {
    %c0_i32 = arith.constant 0 : i32
    %c0_i32_0 = arith.constant 0 : i32
    %c0_i32_1 = arith.constant 0 : i32
    return %c0_i32, %c0_i32_0 : i32, i32
  }
  func.func @transform_4(%arg0: i32) -> (i32, i32) {
    %c0_i32 = arith.constant 0 : i32
    %c0_i32_0 = arith.constant 0 : i32
    %c0_i32_1 = arith.constant 0 : i32
    return %c0_i32, %c0_i32_0 : i32, i32
  }
  func.func @transform_5(%arg0: i32) -> (i32, i32) {
    %c0_i32 = arith.constant 0 : i32
    %c0_i32_0 = arith.constant 0 : i32
    %c0_i32_1 = arith.constant 0 : i32
    return %c0_i32, %c0_i32_0 : i32, i32
  }
  func.func @transform_6(%arg0: i32) -> (i32, i32) {
    %c0_i32 = arith.constant 0 : i32
    %c0_i32_0 = arith.constant 0 : i32
    %c0_i32_1 = arith.constant 0 : i32
    return %c0_i32, %c0_i32_0 : i32, i32
  }
  func.func @transform_7(%arg0: i32) -> (i32, i32, i32) {
    %c0_i32 = arith.constant 0 : i32
    %c0_i32_0 = arith.constant 0 : i32
    %c0_i32_1 = arith.constant 0 : i32
    %c0_i32_2 = arith.constant 0 : i32
    return %c0_i32, %c0_i32_0, %c0_i32_1 : i32, i32, i32
  }
}

</mosaic_0001>

<llo_original>
// kernel: tpu_custom_call.1
$region0: #{tpu_custom_call.1}
  #allocation0 [shape = 'u32[]', space=smem, size = 0x4, offset = 0x4, fixed_abs, tag = 'smem constant byte address 0x4 - core index']
  #allocation1 [shape = 'u32[144,128]{1,0:T(1,128)}', space=vmem, size = 0x12000, scoped, tag = 'internal scratch']
  #allocation2 [shape = 'f32[2,18,128]{2,1,0:T(8,128)}', space=vmem, size = 0x6000, scoped, tag = 'scratch operand']
  %s0 = inlined_call_operand.vmem [shape: f32[2,18,128], index: 0, kind: input, shape index: {}]
  %s1 = inlined_call_operand.hbm [shape: bf16[384,128], index: 1, kind: input, shape index: {}]
  %s2 = inlined_call_operand.hbm [shape: bf16[384,128], index: 2, kind: input, shape index: {}]
  %s3 = inlined_call_operand.vmem [shape: f32[1,128], index: 3, kind: input, shape index: {}]
  %s4 = inlined_call_operand.vmem [shape: f32[1,128], index: 4, kind: input, shape index: {}]
  %s5 = inlined_call_operand.vmem [shape: f32[1,128], index: 5, kind: input, shape index: {}]
  %s6 = inlined_call_operand.vmem [shape: f32[1,128], index: 6, kind: input, shape index: {}]
  %s7 = inlined_call_operand.hbm [shape: f32[2,16,128], index: 7, kind: output, shape index: {}]
  %s8 = sld [smem:[#allocation0]]
  $region46: #{tpu_custom_call.1} parent=0
    _
  %s10 = ssub.s32 1, %s8
  %s11 = scalar_select 0, %s10, %s8
  $region1: #{tpu_custom_call.1} parent=0
    #allocation3 [shape = 'u8[98304]{0}', space=vmem, size = 0x18000, scoped, tag = 'input window, operand 1, single buffered']
    #allocation4 [shape = 's32[1]{0}', space=sflag, size = 0x4, scoped, tag = 'scoped memory for tpu_custom_call.1']
    #allocation5 [shape = 's32[1]{0}', space=sflag, size = 0x4, scoped, tag = 'scoped memory for tpu_custom_call.1']
    #allocation6 [shape = 'u8[98304]{0}', space=vmem, size = 0x18000, scoped, tag = 'input window, operand 2, single buffered']
    #allocation7 [shape = 's32[1]{0}', space=sflag, size = 0x4, scoped, tag = 'scoped memory for tpu_custom_call.1']
    #allocation8 [shape = 'u8[16384]{0}', space=vmem, size = 0x4000, scoped, tag = 'output window, operand 0, single buffered']
    %12 = vsyncpa [#allocation4], 0
    %13 = vsyncpa [#allocation7], 0
    %14 = vsyncpa [#allocation5], 0
    // Predicated region
    $region2: #{tpu_custom_call.1} parent=1 // pred_check
      _
    $region3: #{tpu_custom_call.1} parent=1 // pred_check_branch
      %16 = sbr.rel (0) target = $region5
    $region4: #{tpu_custom_call.1} parent=1 // pred_region
      _
    $region5: #{tpu_custom_call.1} parent=1 // pred_fallthru
      _
    // Predicated region
    $region6: #{tpu_custom_call.1} parent=1 // pred_check
      _
    $region7: #{tpu_custom_call.1} parent=1 // pred_check_branch
      %18 = sbr.rel (0) target = $region9
    $region8: #{tpu_custom_call.1} parent=1 // pred_region
      %s20 = ssub.s32 3072, 3072
      %21 = vsyncadd [#allocation4], %s20
      %s22 = sshll.u32 [#allocation3], 4
      %s23 = int_to_ptr.vmem [resolvable:$true] %s22
      %28 = dma.hbm_to_vmem [thread:$0]  %s1, 3072, %s23, [#allocation4], 64, 64, 4
    $region9: #{tpu_custom_call.1} parent=1 // pred_fallthru
      _
    // Predicated region
    $region10: #{tpu_custom_call.1} parent=1 // pred_check
      _
    $region11: #{tpu_custom_call.1} parent=1 // pred_check_branch
      %30 = sbr.rel (0) target = $region13
    $region12: #{tpu_custom_call.1} parent=1 // pred_region
      %s32 = ssub.s32 3072, 3072
      %33 = vsyncadd [#allocation7], %s32
      %s34 = sshll.u32 [#allocation6], 4
      %s35 = int_to_ptr.vmem [resolvable:$true] %s34
      %40 = dma.hbm_to_vmem [thread:$0]  %s2, 3072, %s35, [#allocation7], 64, 64, 4
    $region13: #{tpu_custom_call.1} parent=1 // pred_fallthru
      _
    // Predicated region
    $region14: #{tpu_custom_call.1} parent=1 // pred_check
      _
    $region15: #{tpu_custom_call.1} parent=1 // pred_check_branch
      %42 = sbr.rel (0) target = $region17
    $region16: #{tpu_custom_call.1} parent=1 // pred_region
      _
    $region17: #{tpu_custom_call.1} parent=1 // pred_fallthru
      _
    // Predicated region
    $region18: #{tpu_custom_call.1} parent=1 // pred_check
      _
    $region19: #{tpu_custom_call.1} parent=1 // pred_check_branch
      %44 = sbr.rel (0) target = $region21
    $region20: #{tpu_custom_call.1} parent=1 // pred_region
      _
    $region21: #{tpu_custom_call.1} parent=1 // pred_fallthru
      _
    // Predicated region
    $region22: #{tpu_custom_call.1} parent=1 // pred_check
      _
    $region23: #{tpu_custom_call.1} parent=1 // pred_check_branch
      %46 = sbr.rel (0) target = $region25
    $region24: #{tpu_custom_call.1} parent=1 // pred_region
      _
    $region25: #{tpu_custom_call.1} parent=1 // pred_fallthru
      _
    // Predicated region
    $region26: #{tpu_custom_call.1} parent=1 // pred_check
      _
    $region27: #{tpu_custom_call.1} parent=1 // pred_check_branch
      %48 = sbr.rel (0) target = $region29
    $region28: #{tpu_custom_call.1} parent=1 // pred_region
      _
    $region29: #{tpu_custom_call.1} parent=1 // pred_fallthru
      _
    // Predicated region
    $region30: #{tpu_custom_call.1} parent=1 // pred_check
      _
    $region31: #{tpu_custom_call.1} parent=1 // pred_check_branch
      %50 = sbr.rel (0) target = $region33
    $region32: #{tpu_custom_call.1} parent=1 // pred_region
      %51 = dma.done [#allocation4], 3072
    $region33: #{tpu_custom_call.1} parent=1 // pred_fallthru
      _
    // Predicated region
    $region34: #{tpu_custom_call.1} parent=1 // pred_check
      _
    $region35: #{tpu_custom_call.1} parent=1 // pred_check_branch
      %53 = sbr.rel (0) target = $region37
    $region36: #{tpu_custom_call.1} parent=1 // pred_region
      %54 = dma.done [#allocation7], 3072
    $region37: #{tpu_custom_call.1} parent=1 // pred_fallthru
      _
    %v56 = vld [vmem:[%s0] sm:$0xff]
    %v57 = vld [vmem:[%s0 + $0x8] sm:$0xff]
    %v58 = vld [vmem:[%s0 + $0x18] sm:$0xff]
    %v59 = vld [vmem:[%s0 + $0x20] sm:$0xff]
    %v60 = vld [vmem:[%s0 + $0x1] sm:$0xff]
    %v61 = vld [vmem:[%s0 + $0x9] sm:$0xff]
    %v62 = vld [vmem:[%s0 + $0x19] sm:$0xff]
    %v63 = vld [vmem:[%s0 + $0x21] sm:$0xff]
    %v64 = vld [vmem:[%s0 + $0x2] sm:$0xff]
    %v65 = vld [vmem:[%s0 + $0xa] sm:$0xff]
    %v66 = vld [vmem:[%s0 + $0x1a] sm:$0xff]
    %v67 = vld [vmem:[%s0 + $0x22] sm:$0xff]
    %v68 = vpack.c.bf16 %v57, %v56
    %v69 = vpack.c.bf16 %v61, %v60
    %v70 = vpack.c.bf16 %v65, %v64
    %v71 = vpack.c.bf16 %v59, %v58
    %v72 = vpack.c.bf16 %v63, %v62
    %v73 = vpack.c.bf16 %v67, %v66
    %v74 = vld [vmem:[#allocation3] sm:$0xf]
    %v75 = vld [vmem:[#allocation3 + $0x4] sm:$0xf]
    %v76 = vld [vmem:[#allocation3 + $0x8] sm:$0xf]
    %v77 = vld [vmem:[#allocation3 + $0xc] sm:$0xf]
    %v78 = vld [vmem:[#allocation3 + $0x10] sm:$0xf]
    %v79 = vld [vmem:[#allocation3 + $0x14] sm:$0xf]
    %v80 = vld [vmem:[#allocation3 + $0x18] sm:$0xf]
    %v81 = vld [vmem:[#allocation3 + $0x1c] sm:$0xf]
    %v82 = vld [vmem:[#allocation3 + $0x20] sm:$0xf]
    %v83 = vld [vmem:[#allocation3 + $0x24] sm:$0xf]
    %v84 = vld [vmem:[#allocation3 + $0x28] sm:$0xf]
    %v85 = vld [vmem:[#allocation3 + $0x2c] sm:$0xf]
    %v86 = vld [vmem:[#allocation3 + $0x30] sm:$0xf]
    %v87 = vld [vmem:[#allocation3 + $0x34] sm:$0xf]
    %v88 = vld [vmem:[#allocation3 + $0x38] sm:$0xf]
    %v89 = vld [vmem:[#allocation3 + $0x3c] sm:$0xf]
    %v90 = vld [vmem:[#allocation3 + $0x40] sm:$0xf]
    %v91 = vld [vmem:[#allocation3 + $0x44] sm:$0xf]
    %v92 = vld [vmem:[#allocation3 + $0x48] sm:$0xf]
    %v93 = vld [vmem:[#allocation3 + $0x4c] sm:$0xf]
    %v94 = vld [vmem:[#allocation3 + $0x50] sm:$0xf]
    %v95 = vld [vmem:[#allocation3 + $0x54] sm:$0xf]
    %v96 = vld [vmem:[#allocation3 + $0x58] sm:$0xf]
    %v97 = vld [vmem:[#allocation3 + $0x5c] sm:$0xf]
    %v98 = vld [vmem:[#allocation3 + $0x60] sm:$0xf]
    %v99 = vld [vmem:[#allocation3 + $0x64] sm:$0xf]
    %v100 = vld [vmem:[#allocation3 + $0x68] sm:$0xf]
    %v101 = vld [vmem:[#allocation3 + $0x6c] sm:$0xf]
    %v102 = vld [vmem:[#allocation3 + $0x70] sm:$0xf]
    %v103 = vld [vmem:[#allocation3 + $0x74] sm:$0xf]
    %v104 = vld [vmem:[#allocation3 + $0x78] sm:$0xf]
    %v105 = vld [vmem:[#allocation3 + $0x7c] sm:$0xf]
    %v106 = vld [vmem:[#allocation3 + $0x80] sm:$0xf]
    %v107 = vld [vmem:[#allocation3 + $0x84] sm:$0xf]
    %v108 = vld [vmem:[#allocation3 + $0x88] sm:$0xf]
    %v109 = vld [vmem:[#allocation3 + $0x8c] sm:$0xf]
    %v110 = vld [vmem:[#allocation3 + $0x90] sm:$0xf]
    %v111 = vld [vmem:[#allocation3 + $0x94] sm:$0xf]
    %v112 = vld [vmem:[#allocation3 + $0x98] sm:$0xf]
    %v113 = vld [vmem:[#allocation3 + $0x9c] sm:$0xf]
    %v114 = vld [vmem:[#allocation3 + $0xa0] sm:$0xf]
    %v115 = vld [vmem:[#allocation3 + $0xa4] sm:$0xf]
    %v116 = vld [vmem:[#allocation3 + $0xa8] sm:$0xf]
    %v117 = vld [vmem:[#allocation3 + $0xac] sm:$0xf]
    %v118 = vld [vmem:[#allocation3 + $0xb0] sm:$0xf]
    %v119 = vld [vmem:[#allocation3 + $0xb4] sm:$0xf]
    %v120 = vld [vmem:[#allocation3 + $0xb8] sm:$0xf]
    %v121 = vld [vmem:[#allocation3 + $0xbc] sm:$0xf]
    %v170 = vunpack.c.l.b16 %v74
    %v171 = vunpack.c.l.b16 %v75
    %v172 = vunpack.c.l.b16 %v76
    %v173 = vunpack.c.l.b16 %v77
    %v174 = vunpack.c.l.b16 %v78
    %v175 = vunpack.c.l.b16 %v79
    %v176 = vunpack.c.l.b16 %v80
    %v177 = vunpack.c.l.b16 %v81
    %v178 = vunpack.c.l.b16 %v82
    %v179 = vunpack.c.l.b16 %v83
    %v180 = vunpack.c.l.b16 %v84
    %v181 = vunpack.c.l.b16 %v85
    %v182 = vunpack.c.l.b16 %v86
    %v183 = vunpack.c.l.b16 %v87
    %v184 = vunpack.c.l.b16 %v88
    %v185 = vunpack.c.l.b16 %v89
    %v186 = vunpack.c.l.b16 %v90
    %v187 = vunpack.c.l.b16 %v91
    %v188 = vunpack.c.l.b16 %v92
    %v189 = vunpack.c.l.b16 %v93
    %v190 = vunpack.c.l.b16 %v94
    %v191 = vunpack.c.l.b16 %v95
    %v192 = vunpack.c.l.b16 %v96
    %v193 = vunpack.c.l.b16 %v97
    %v194 = vunpack.c.l.b16 %v98
    %v195 = vunpack.c.l.b16 %v99
    %v196 = vunpack.c.l.b16 %v100
    %v197 = vunpack.c.l.b16 %v101
    %v198 = vunpack.c.l.b16 %v102
    %v199 = vunpack.c.l.b16 %v103
    %v200 = vunpack.c.l.b16 %v104
    %v201 = vunpack.c.l.b16 %v105
    %v202 = vunpack.c.l.b16 %v106
    %v203 = vunpack.c.l.b16 %v107
    %v204 = vunpack.c.l.b16 %v108
    %v205 = vunpack.c.l.b16 %v109
    %v206 = vunpack.c.l.b16 %v110
    %v207 = vunpack.c.l.b16 %v111
    %v208 = vunpack.c.l.b16 %v112
    %v209 = vunpack.c.l.b16 %v113
    %v210 = vunpack.c.l.b16 %v114
    %v211 = vunpack.c.l.b16 %v115
    %v212 = vunpack.c.l.b16 %v116
    %v213 = vunpack.c.l.b16 %v117
    %v214 = vunpack.c.l.b16 %v118
    %v215 = vunpack.c.l.b16 %v119
    %v216 = vunpack.c.l.b16 %v120
    %v217 = vunpack.c.l.b16 %v121
    %v218 = vpack.c.b16 %v171, %v170
    %v219 = vpack.c.b16 %v173, %v172
    %v220 = vpack.c.b16 %v175, %v174
    %v221 = vpack.c.b16 %v177, %v176
    %v222 = vpack.c.b16 %v179, %v178
    %v223 = vpack.c.b16 %v181, %v180
    %v224 = vpack.c.b16 %v183, %v182
    %v225 = vpack.c.b16 %v185, %v184
    %v226 = vpack.c.b16 %v187, %v186
    %v227 = vpack.c.b16 %v189, %v188
    %v228 = vpack.c.b16 %v191, %v190
    %v229 = vpack.c.b16 %v193, %v192
    %v230 = vpack.c.b16 %v195, %v194
    %v231 = vpack.c.b16 %v197, %v196
    %v232 = vpack.c.b16 %v199, %v198
    %v233 = vpack.c.b16 %v201, %v200
    %v234 = vpack.c.b16 %v203, %v202
    %v235 = vpack.c.b16 %v205, %v204
    %v236 = vpack.c.b16 %v207, %v206
    %v237 = vpack.c.b16 %v209, %v208
    %v238 = vpack.c.b16 %v211, %v210
    %v239 = vpack.c.b16 %v213, %v212
    %v240 = vpack.c.b16 %v215, %v214
    %v241 = vpack.c.b16 %v217, %v216
    %266 = vmatprep.subr.bf16.mxu0 0
    %267 = vmatpush1.bf16.msra.mxu0 %v218
    %268 = vmatprep.subr.bf16.mxu0 0
    %269 = vmatpush1.bf16.msra.mxu0 %v219
    %270 = vmatprep.subr.bf16.mxu0 0
    %271 = vmatpush1.bf16.msra.mxu0 %v220
    %272 = vmatprep.subr.bf16.mxu0 0
    %273 = vmatpush1.bf16.msra.mxu0 %v221
    %274 = vmatprep.subr.bf16.mxu0 0
    %275 = vmatpush1.bf16.msra.mxu0 %v222
    %276 = vmatprep.subr.bf16.mxu0 0
    %277 = vmatpush1.bf16.msra.mxu0 %v223
    %278 = vmatprep.subr.bf16.mxu0 0
    %279 = vmatpush1.bf16.msra.mxu0 %v224
    %280 = vmatprep.subr.bf16.mxu0 0
    %281 = vmatpush1.bf16.msra.mxu0 %v225
    %282 = vmatprep.subr.bf16.mxu0 0
    %283 = vmatpush1.bf16.msra.mxu0 %v226
    %284 = vmatprep.subr.bf16.mxu0 0
    %285 = vmatpush1.bf16.msra.mxu0 %v227
    %286 = vmatprep.subr.bf16.mxu0 0
    %287 = vmatpush1.bf16.msra.mxu0 %v228
    %288 = vmatprep.subr.bf16.mxu0 0
    %289 = vmatpush1.bf16.msra.mxu0 %v229
    %290 = vmatprep.subr.bf16.mxu0 0
    %291 = vmatpush1.bf16.msra.mxu0 %v230
    %292 = vmatprep.subr.bf16.mxu0 0
    %293 = vmatpush1.bf16.msra.mxu0 %v231
    %294 = vmatprep.subr.bf16.mxu0 0
    %295 = vmatpush1.bf16.msra.mxu0 %v232
    %296 = vmatprep.subr.bf16.mxu0 0
    %297 = vmatpush1.bf16.msra.mxu0 %v233
    %298 = vmatprep.mubr.bf16.mxu0 %v69
    %299 = vmatmul.mubr.bf16.gmra.mrb[0].mxu0 %v68
    %v300 = vpop.f32.mrb[0].mxu0
    %v301 = vadd.f32 0.0, %v300
    %v302 = vpop.f32.mrb[0].mxu0
    %v303 = vpop.f32.mrb[0].mxu0
    %v304 = vadd.f32 0.0, %v303
    %v305 = vpop.f32.mrb[0].mxu0
    %306 = vmatprep.mubr.bf16.mxu0 %v72
    %307 = vmatmul.mubr.bf16.gmra.mrb[0].mxu0 %v71
    %v308 = vpop.f32.mrb[0].mxu0
    %v309 = vadd.f32 0.0, %v308
    %v310 = vpop.f32.mrb[0].mxu0
    %v311 = vpop.f32.mrb[0].mxu0
    %v312 = vadd.f32 0.0, %v311
    %v313 = vpop.f32.mrb[0].mxu0
    %314 = vdwg.mxu0
    %315 = vmatprep.subr.bf16.mxu0 0
    %316 = vmatpush1.bf16.msra.mxu0 %v234
    %317 = vmatprep.subr.bf16.mxu0 0
    %318 = vmatpush1.bf16.msra.mxu0 %v235
    %319 = vmatprep.subr.bf16.mxu0 0
    %320 = vmatpush1.bf16.msra.mxu0 %v236
    %321 = vmatprep.subr.bf16.mxu0 0
    %322 = vmatpush1.bf16.msra.mxu0 %v237
    %323 = vmatprep.subr.bf16.mxu0 0
    %324 = vmatpush1.bf16.msra.mxu0 %v238
    %325 = vmatprep.subr.bf16.mxu0 0
    %326 = vmatpush1.bf16.msra.mxu0 %v239
    %327 = vmatprep.subr.bf16.mxu0 0
    %328 = vmatpush1.bf16.msra.mxu0 %v240
    %329 = vmatprep.subr.bf16.mxu0 0
    %330 = vmatpush1.bf16.msra.mxu0 %v241
    %331 = vmatprep.subr.bf16.mxu0 0
    %332 = vmatpush1.bf16.msra.mxu0 0
    %333 = vmatprep.subr.bf16.mxu0 0
    %334 = vmatpush1.bf16.msra.mxu0 0
    %335 = vmatprep.subr.bf16.mxu0 0
    %336 = vmatpush1.bf16.msra.mxu0 0
    %337 = vmatprep.subr.bf16.mxu0 0
    %338 = vmatpush1.bf16.msra.mxu0 0
    %339 = vmatprep.subr.bf16.mxu0 0
    %340 = vmatpush1.bf16.msra.mxu0 0
    %341 = vmatprep.subr.bf16.mxu0 0
    %342 = vmatpush1.bf16.msra.mxu0 0
    %343 = vmatprep.subr.bf16.mxu0 0
    %344 = vmatpush1.bf16.msra.mxu0 0
    %345 = vmatprep.subr.bf16.mxu0 0
    %346 = vmatpush1.bf16.msra.mxu0 0
    %347 = vmatprep.mubr.bf16.mxu0 0
    %348 = vmatmul.mubr.bf16.gmra.mrb[0].mxu0 %v70
    %v349 = vpop.f32.mrb[0].mxu0
    %v350 = vadd.f32 %v301, %v349
    %v351 = vpop.f32.mrb[0].mxu0
    %v352 = vpop.f32.mrb[0].mxu0
    %v353 = vadd.f32 %v304, %v352
    %v354 = vpop.f32.mrb[0].mxu0
    %355 = vmatprep.mubr.bf16.mxu0 0
    %356 = vmatmul.mubr.bf16.gmra.mrb[0].mxu0 %v73
    %v357 = vpop.f32.mrb[0].mxu0
    %v358 = vadd.f32 %v309, %v357
    %v359 = vpop.f32.mrb[0].mxu0
    %v360 = vpop.f32.mrb[0].mxu0
    %v361 = vadd.f32 %v312, %v360
    %v362 = vpop.f32.mrb[0].mxu0
    %363 = vdwg.mxu0
    %v364 = vadd.f32 %v350, %v353
    %v365 = vadd.f32 %v364, %v358
    %v366 = vadd.f32 %v365, %v361
    %v367 = vrot.slane %v366, 4
    %v368 = vadd.f32 %v366, %v367
    %v369 = vrot.slane %v368, 2
    %v370 = vadd.f32 %v368, %v369
    %v371 = vrot.slane %v370, 1
    %v372 = vadd.f32 %v370, %v371
    %v373 = vrcp.pop 32.0
    %v374 = vmul.f32 %v372, %v373
    %v375 = vsub.f32 %v350, %v374
    %v376 = vsub.f32 %v353, %v374
    %v377 = vsub.f32 %v358, %v374
    %v378 = vsub.f32 %v361, %v374
    %v379 = vmul.f32 %v375, %v375
    %v380 = vmul.f32 %v376, %v376
    %v381 = vmul.f32 %v377, %v377
    %v382 = vmul.f32 %v378, %v378
    %v383 = vadd.f32 %v379, %v380
    %v384 = vadd.f32 %v383, %v381
    %v385 = vadd.f32 %v384, %v382
    %v386 = vrot.slane %v385, 4
    %v387 = vadd.f32 %v385, %v386
    %v388 = vrot.slane %v387, 2
    %v389 = vadd.f32 %v387, %v388
    %v390 = vrot.slane %v389, 1
    %v391 = vadd.f32 %v389, %v390
    %v392 = vmul.f32 %v391, %v373
    %v393 = vld [vmem:[%s3] sm:$0x1]
    %v395 = vlaneseq
    %v396 = vshrl.u32 %v395, 7
    %v397 = vsub.s32 0, %v396
    %v398 = vrot.slane %v393, %v397
    %v400 = vmul.f32 %v398, %v375
    %v401 = vmul.f32 %v398, %v376
    %v402 = vmul.f32 %v398, %v377
    %v403 = vmul.f32 %v398, %v378
    %v404 = vadd.f32 %v392, 1e-05
    %v405 = vrsqrt.pop %v404
    %v406 = vmul.f32 %v400, %v405
    %v407 = vmul.f32 %v401, %v405
    %v408 = vmul.f32 %v402, %v405
    %v409 = vmul.f32 %v403, %v405
    %v410 = vld [vmem:[%s4] sm:$0x1]
    %v412 = vlaneseq
    %v413 = vshrl.u32 %v412, 7
    %v414 = vsub.s32 0, %v413
    %v415 = vrot.slane %v410, %v414
    %v417 = vadd.f32 %v406, %v415
    %v418 = vadd.f32 %v407, %v415
    %v419 = vadd.f32 %v408, %v415
    %v420 = vadd.f32 %v409, %v415
    %v421 = vmax.f32 %v417, 0.0
    %v422 = vmax.f32 %v418, 0.0
    %v423 = vmax.f32 %v419, 0.0
    %v424 = vmax.f32 %v420, 0.0
    %425 = vst [vmem:[#allocation2] sm:$0x1] 0.0
    %426 = vst [vmem:[#allocation2 + $0x18] sm:$0x1] 0.0
    %427 = vst [vmem:[#allocation2 + $0x11] sm:$0x1] 0.0
    %428 = vst [vmem:[#allocation2 + $0x29] sm:$0x1] 0.0
    %429 = vst [vmem:[#allocation2 + $0x1] sm:$0xff] %v421
    %430 = vst [vmem:[#allocation2 + $0x9] sm:$0xff] %v422
    %431 = vst [vmem:[#allocation2 + $0x19] sm:$0xff] %v423
    %432 = vst [vmem:[#allocation2 + $0x21] sm:$0xff] %v424
    %v433 = vld [vmem:[#allocation2] sm:$0xff]
    %v434 = vld [vmem:[#allocation2 + $0x8] sm:$0xff]
    %v435 = vld [vmem:[#allocation2 + $0x18] sm:$0xff]
    %v436 = vld [vmem:[#allocation2 + $0x20] sm:$0xff]
    %v437 = vld [vmem:[#allocation2 + $0x2] sm:$0xff]
    %v438 = vld [vmem:[#allocation2 + $0xa] sm:$0xff]
    %v439 = vld [vmem:[#allocation2 + $0x1a] sm:$0xff]
    %v440 = vld [vmem:[#allocation2 + $0x22] sm:$0xff]
    %v441 = vpack.c.bf16 %v434, %v433
    %v442 = vpack.c.bf16 %v422, %v421
    %v443 = vpack.c.bf16 %v438, %v437
    %v444 = vpack.c.bf16 %v436, %v435
    %v445 = vpack.c.bf16 %v424, %v423
    %v446 = vpack.c.bf16 %v440, %v439
    %v447 = vld [vmem:[#allocation6] sm:$0xf]
    %v448 = vld [vmem:[#allocation6 + $0x4] sm:$0xf]
    %v449 = vld [vmem:[#allocation6 + $0x8] sm:$0xf]
    %v450 = vld [vmem:[#allocation6 + $0xc] sm:$0xf]
    %v451 = vld [vmem:[#allocation6 + $0x10] sm:$0xf]
    %v452 = vld [vmem:[#allocation6 + $0x14] sm:$0xf]
    %v453 = vld [vmem:[#allocation6 + $0x18] sm:$0xf]
    %v454 = vld [vmem:[#allocation6 + $0x1c] sm:$0xf]
    %v455 = vld [vmem:[#allocation6 + $0x20] sm:$0xf]
    %v456 = vld [vmem:[#allocation6 + $0x24] sm:$0xf]
    %v457 = vld [vmem:[#allocation6 + $0x28] sm:$0xf]
    %v458 = vld [vmem:[#allocation6 + $0x2c] sm:$0xf]
    %v459 = vld [vmem:[#allocation6 + $0x30] sm:$0xf]
    %v460 = vld [vmem:[#allocation6 + $0x34] sm:$0xf]
    %v461 = vld [vmem:[#allocation6 + $0x38] sm:$0xf]
    %v462 = vld [vmem:[#allocation6 + $0x3c] sm:$0xf]
    %v463 = vld [vmem:[#allocation6 + $0x40] sm:$0xf]
    %v464 = vld [vmem:[#allocation6 + $0x44] sm:$0xf]
    %v465 = vld [vmem:[#allocation6 + $0x48] sm:$0xf]
    %v466 = vld [vmem:[#allocation6 + $0x4c] sm:$0xf]
    %v467 = vld [vmem:[#allocation6 + $0x50] sm:$0xf]
    %v468 = vld [vmem:[#allocation6 + $0x54] sm:$0xf]
    %v469 = vld [vmem:[#allocation6 + $0x58] sm:$0xf]
    %v470 = vld [vmem:[#allocation6 + $0x5c] sm:$0xf]
    %v471 = vld [vmem:[#allocation6 + $0x60] sm:$0xf]
    %v472 = vld [vmem:[#allocation6 + $0x64] sm:$0xf]
    %v473 = vld [vmem:[#allocation6 + $0x68] sm:$0xf]
    %v474 = vld [vmem:[#allocation6 + $0x6c] sm:$0xf]
    %v475 = vld [vmem:[#allocation6 + $0x70] sm:$0xf]
    %v476 = vld [vmem:[#allocation6 + $0x74] sm:$0xf]
    %v477 = vld [vmem:[#allocation6 + $0x78] sm:$0xf]
    %v478 = vld [vmem:[#allocation6 + $0x7c] sm:$0xf]
    %v479 = vld [vmem:[#allocation6 + $0x80] sm:$0xf]
    %v480 = vld [vmem:[#allocation6 + $0x84] sm:$0xf]
    %v481 = vld [vmem:[#allocation6 + $0x88] sm:$0xf]
    %v482 = vld [vmem:[#allocation6 + $0x8c] sm:$0xf]
    %v483 = vld [vmem:[#allocation6 + $0x90] sm:$0xf]
    %v484 = vld [vmem:[#allocation6 + $0x94] sm:$0xf]
    %v485 = vld [vmem:[#allocation6 + $0x98] sm:$0xf]
    %v486 = vld [vmem:[#allocation6 + $0x9c] sm:$0xf]
    %v487 = vld [vmem:[#allocation6 + $0xa0] sm:$0xf]
    %v488 = vld [vmem:[#allocation6 + $0xa4] sm:$0xf]
    %v489 = vld [vmem:[#allocation6 + $0xa8] sm:$0xf]
    %v490 = vld [vmem:[#allocation6 + $0xac] sm:$0xf]
    %v491 = vld [vmem:[#allocation6 + $0xb0] sm:$0xf]
    %v492 = vld [vmem:[#allocation6 + $0xb4] sm:$0xf]
    %v493 = vld [vmem:[#allocation6 + $0xb8] sm:$0xf]
    %v494 = vld [vmem:[#allocation6 + $0xbc] sm:$0xf]
    %v543 = vunpack.c.l.b16 %v447
    %v544 = vunpack.c.l.b16 %v448
    %v545 = vunpack.c.l.b16 %v449
    %v546 = vunpack.c.l.b16 %v450
    %v547 = vunpack.c.l.b16 %v451
    %v548 = vunpack.c.l.b16 %v452
    %v549 = vunpack.c.l.b16 %v453
    %v550 = vunpack.c.l.b16 %v454
    %v551 = vunpack.c.l.b16 %v455
    %v552 = vunpack.c.l.b16 %v456
    %v553 = vunpack.c.l.b16 %v457
    %v554 = vunpack.c.l.b16 %v458
    %v555 = vunpack.c.l.b16 %v459
    %v556 = vunpack.c.l.b16 %v460
    %v557 = vunpack.c.l.b16 %v461
    %v558 = vunpack.c.l.b16 %v462
    %v559 = vunpack.c.l.b16 %v463
    %v560 = vunpack.c.l.b16 %v464
    %v561 = vunpack.c.l.b16 %v465
    %v562 = vunpack.c.l.b16 %v466
    %v563 = vunpack.c.l.b16 %v467
    %v564 = vunpack.c.l.b16 %v468
    %v565 = vunpack.c.l.b16 %v469
    %v566 = vunpack.c.l.b16 %v470
    %v567 = vunpack.c.l.b16 %v471
    %v568 = vunpack.c.l.b16 %v472
    %v569 = vunpack.c.l.b16 %v473
    %v570 = vunpack.c.l.b16 %v474
    %v571 = vunpack.c.l.b16 %v475
    %v572 = vunpack.c.l.b16 %v476
    %v573 = vunpack.c.l.b16 %v477
    %v574 = vunpack.c.l.b16 %v478
    %v575 = vunpack.c.l.b16 %v479
    %v576 = vunpack.c.l.b16 %v480
    %v577 = vunpack.c.l.b16 %v481
    %v578 = vunpack.c.l.b16 %v482
    %v579 = vunpack.c.l.b16 %v483
    %v580 = vunpack.c.l.b16 %v484
    %v581 = vunpack.c.l.b16 %v485
    %v582 = vunpack.c.l.b16 %v486
    %v583 = vunpack.c.l.b16 %v487
    %v584 = vunpack.c.l.b16 %v488
    %v585 = vunpack.c.l.b16 %v489
    %v586 = vunpack.c.l.b16 %v490
    %v587 = vunpack.c.l.b16 %v491
    %v588 = vunpack.c.l.b16 %v492
    %v589 = vunpack.c.l.b16 %v493
    %v590 = vunpack.c.l.b16 %v494
    %v591 = vpack.c.b16 %v544, %v543
    %v592 = vpack.c.b16 %v546, %v545
    %v593 = vpack.c.b16 %v548, %v547
    %v594 = vpack.c.b16 %v550, %v549
    %v595 = vpack.c.b16 %v552, %v551
    %v596 = vpack.c.b16 %v554, %v553
    %v597 = vpack.c.b16 %v556, %v555
    %v598 = vpack.c.b16 %v558, %v557
    %v599 = vpack.c.b16 %v560, %v559
    %v600 = vpack.c.b16 %v562, %v561
    %v601 = vpack.c.b16 %v564, %v563
    %v602 = vpack.c.b16 %v566, %v565
    %v603 = vpack.c.b16 %v568, %v567
    %v604 = vpack.c.b16 %v570, %v569
    %v605 = vpack.c.b16 %v572, %v571
    %v606 = vpack.c.b16 %v574, %v573
    %v607 = vpack.c.b16 %v576, %v575
    %v608 = vpack.c.b16 %v578, %v577
    %v609 = vpack.c.b16 %v580, %v579
    %v610 = vpack.c.b16 %v582, %v581
    %v611 = vpack.c.b16 %v584, %v583
    %v612 = vpack.c.b16 %v586, %v585
    %v613 = vpack.c.b16 %v588, %v587
    %v614 = vpack.c.b16 %v590, %v589
    %639 = vmatprep.subr.bf16.mxu0 0
    %640 = vmatpush1.bf16.msra.mxu0 %v591
    %641 = vmatprep.subr.bf16.mxu0 0
    %642 = vmatpush1.bf16.msra.mxu0 %v592
    %643 = vmatprep.subr.bf16.mxu0 0
    %644 = vmatpush1.bf16.msra.mxu0 %v593
    %645 = vmatprep.subr.bf16.mxu0 0
    %646 = vmatpush1.bf16.msra.mxu0 %v594
    %647 = vmatprep.subr.bf16.mxu0 0
    %648 = vmatpush1.bf16.msra.mxu0 %v595
    %649 = vmatprep.subr.bf16.mxu0 0
    %650 = vmatpush1.bf16.msra.mxu0 %v596
    %651 = vmatprep.subr.bf16.mxu0 0
    %652 = vmatpush1.bf16.msra.mxu0 %v597
    %653 = vmatprep.subr.bf16.mxu0 0
    %654 = vmatpush1.bf16.msra.mxu0 %v598
    %655 = vmatprep.subr.bf16.mxu0 0
    %656 = vmatpush1.bf16.msra.mxu0 %v599
    %657 = vmatprep.subr.bf16.mxu0 0
    %658 = vmatpush1.bf16.msra.mxu0 %v600
    %659 = vmatprep.subr.bf16.mxu0 0
    %660 = vmatpush1.bf16.msra.mxu0 %v601
    %661 = vmatprep.subr.bf16.mxu0 0
    %662 = vmatpush1.bf16.msra.mxu0 %v602
    %663 = vmatprep.subr.bf16.mxu0 0
    %664 = vmatpush1.bf16.msra.mxu0 %v603
    %665 = vmatprep.subr.bf16.mxu0 0
    %666 = vmatpush1.bf16.msra.mxu0 %v604
    %667 = vmatprep.subr.bf16.mxu0 0
    %668 = vmatpush1.bf16.msra.mxu0 %v605
    %669 = vmatprep.subr.bf16.mxu0 0
    %670 = vmatpush1.bf16.msra.mxu0 %v606
    %671 = vmatprep.mubr.bf16.mxu0 %v442
    %672 = vmatmul.mubr.bf16.gmra.mrb[0].mxu0 %v441
    %v673 = vpop.f32.mrb[0].mxu0
    %v674 = vadd.f32 0.0, %v673
    %v675 = vpop.f32.mrb[0].mxu0
    %v676 = vpop.f32.mrb[0].mxu0
    %v677 = vadd.f32 0.0, %v676
    %v678 = vpop.f32.mrb[0].mxu0
    %679 = vmatprep.mubr.bf16.mxu0 %v445
    %680 = vmatmul.mubr.bf16.gmra.mrb[0].mxu0 %v444
    %v681 = vpop.f32.mrb[0].mxu0
    %v682 = vadd.f32 0.0, %v681
    %v683 = vpop.f32.mrb[0].mxu0
    %v684 = vpop.f32.mrb[0].mxu0
    %v685 = vadd.f32 0.0, %v684
    %v686 = vpop.f32.mrb[0].mxu0
    %687 = vdwg.mxu0
    %688 = vmatprep.subr.bf16.mxu0 0
    %689 = vmatpush1.bf16.msra.mxu0 %v607
    %690 = vmatprep.subr.bf16.mxu0 0
    %691 = vmatpush1.bf16.msra.mxu0 %v608
    %692 = vmatprep.subr.bf16.mxu0 0
    %693 = vmatpush1.bf16.msra.mxu0 %v609
    %694 = vmatprep.subr.bf16.mxu0 0
    %695 = vmatpush1.bf16.msra.mxu0 %v610
    %696 = vmatprep.subr.bf16.mxu0 0
    %697 = vmatpush1.bf16.msra.mxu0 %v611
    %698 = vmatprep.subr.bf16.mxu0 0
    %699 = vmatpush1.bf16.msra.mxu0 %v612
    %700 = vmatprep.subr.bf16.mxu0 0
    %701 = vmatpush1.bf16.msra.mxu0 %v613
    %702 = vmatprep.subr.bf16.mxu0 0
    %703 = vmatpush1.bf16.msra.mxu0 %v614
    %704 = vmatprep.subr.bf16.mxu0 0
    %705 = vmatpush1.bf16.msra.mxu0 0
    %706 = vmatprep.subr.bf16.mxu0 0
    %707 = vmatpush1.bf16.msra.mxu0 0
    %708 = vmatprep.subr.bf16.mxu0 0
    %709 = vmatpush1.bf16.msra.mxu0 0
    %710 = vmatprep.subr.bf16.mxu0 0
    %711 = vmatpush1.bf16.msra.mxu0 0
    %712 = vmatprep.subr.bf16.mxu0 0
    %713 = vmatpush1.bf16.msra.mxu0 0
    %714 = vmatprep.subr.bf16.mxu0 0
    %715 = vmatpush1.bf16.msra.mxu0 0
    %716 = vmatprep.subr.bf16.mxu0 0
    %717 = vmatpush1.bf16.msra.mxu0 0
    %718 = vmatprep.subr.bf16.mxu0 0
    %719 = vmatpush1.bf16.msra.mxu0 0
    %720 = vmatprep.mubr.bf16.mxu0 0
    %721 = vmatmul.mubr.bf16.gmra.mrb[0].mxu0 %v443
    %v722 = vpop.f32.mrb[0].mxu0
    %v723 = vadd.f32 %v674, %v722
    %v724 = vpop.f32.mrb[0].mxu0
    %v725 = vpop.f32.mrb[0].mxu0
    %v726 = vadd.f32 %v677, %v725
    %v727 = vpop.f32.mrb[0].mxu0
    %728 = vmatprep.mubr.bf16.mxu0 0
    %729 = vmatmul.mubr.bf16.gmra.mrb[0].mxu0 %v446
    %v730 = vpop.f32.mrb[0].mxu0
    %v731 = vadd.f32 %v682, %v730
    %v732 = vpop.f32.mrb[0].mxu0
    %v733 = vpop.f32.mrb[0].mxu0
    %v734 = vadd.f32 %v685, %v733
    %v735 = vpop.f32.mrb[0].mxu0
    %736 = vdwg.mxu0
    %v737 = vadd.f32 %v723, %v726
    %v738 = vadd.f32 %v737, %v731
    %v739 = vadd.f32 %v738, %v734
    %v740 = vrot.slane %v739, 4
    %v741 = vadd.f32 %v739, %v740
    %v742 = vrot.slane %v741, 2
    %v743 = vadd.f32 %v741, %v742
    %v744 = vrot.slane %v743, 1
    %v745 = vadd.f32 %v743, %v744
    %v746 = vmul.f32 %v745, %v373
    %v747 = vsub.f32 %v723, %v746
    %v748 = vsub.f32 %v726, %v746
    %v749 = vsub.f32 %v731, %v746
    %v750 = vsub.f32 %v734, %v746
    %v751 = vmul.f32 %v747, %v747
    %v752 = vmul.f32 %v748, %v748
    %v753 = vmul.f32 %v749, %v749
    %v754 = vmul.f32 %v750, %v750
    %v755 = vadd.f32 %v751, %v752
    %v756 = vadd.f32 %v755, %v753
    %v757 = vadd.f32 %v756, %v754
    %v758 = vrot.slane %v757, 4
    %v759 = vadd.f32 %v757, %v758
    %v760 = vrot.slane %v759, 2
    %v761 = vadd.f32 %v759, %v760
    %v762 = vrot.slane %v761, 1
    %v763 = vadd.f32 %v761, %v762
    %v764 = vmul.f32 %v763, %v373
    %v765 = vld [vmem:[%s5] sm:$0x1]
    %v767 = vlaneseq
    %v768 = vshrl.u32 %v767, 7
    %v769 = vsub.s32 0, %v768
    %v770 = vrot.slane %v765, %v769
    %v772 = vmul.f32 %v770, %v747
    %v773 = vmul.f32 %v770, %v748
    %v774 = vmul.f32 %v770, %v749
    %v775 = vmul.f32 %v770, %v750
    %v776 = vadd.f32 %v764, 1e-05
    %v777 = vrsqrt.pop %v776
    %v778 = vmul.f32 %v772, %v777
    %v779 = vmul.f32 %v773, %v777
    %v780 = vmul.f32 %v774, %v777
    %v781 = vmul.f32 %v775, %v777
    %v782 = vld [vmem:[%s6] sm:$0x1]
    %v784 = vlaneseq
    %v785 = vshrl.u32 %v784, 7
    %v786 = vsub.s32 0, %v785
    %v787 = vrot.slane %v782, %v786
    %v789 = vadd.f32 %v778, %v787
    %v790 = vadd.f32 %v779, %v787
    %v791 = vadd.f32 %v780, %v787
    %v792 = vadd.f32 %v781, %v787
    %v793 = vadd.f32 %v789, %v60
    %v794 = vadd.f32 %v790, %v61
    %v795 = vadd.f32 %v791, %v62
    %v796 = vadd.f32 %v792, %v63
    %v797 = vmax.f32 %v793, 0.0
    %v798 = vmax.f32 %v794, 0.0
    %v799 = vmax.f32 %v795, 0.0
    %v800 = vmax.f32 %v796, 0.0
    %801 = vst [vmem:[#allocation8] sm:$0xff] %v797
    %802 = vst [vmem:[#allocation8 + $0x8] sm:$0xff] %v798
    %803 = vst [vmem:[#allocation8 + $0x10] sm:$0xff] %v799
    %804 = vst [vmem:[#allocation8 + $0x18] sm:$0xff] %v800
    // Predicated region
    $region38: #{tpu_custom_call.1} parent=1 // pred_check
      _
    $region39: #{tpu_custom_call.1} parent=1 // pred_check_branch
      %806 = sbr.rel (0) target = $region41
    $region40: #{tpu_custom_call.1} parent=1 // pred_region
      %s808 = ssub.s32 512, 512
      %809 = vsyncadd [#allocation5], %s808
      %s810 = sshll.u32 [#allocation8], 4
      %s811 = int_to_ptr.vmem [resolvable:$true] %s810
      %816 = dma.vmem_to_hbm [thread:$0]  %s811, 512, %s7, [#allocation5], 128, 128, 8
    $region41: #{tpu_custom_call.1} parent=1 // pred_fallthru
      _
    // Predicated region
    $region42: #{tpu_custom_call.1} parent=1 // pred_check
      _
    $region43: #{tpu_custom_call.1} parent=1 // pred_check_branch
      %818 = sbr.rel (0) target = $region45
    $region44: #{tpu_custom_call.1} parent=1 // pred_region
      %819 = dma.done [#allocation5], 512
    $region45: #{tpu_custom_call.1} parent=1 // pred_fallthru
      _
    %820 = vsyncpa [#allocation4], 1
    %821 = vsyncpa [#allocation7], 1
    %822 = vsyncpa [#allocation5], 1

</llo_original>
